<compile_context>
chip_gen: v6e
topology: v6e:2x2x1
jax: 0.10.0
libtpu: 0.0.40
codegen_flags: <defaults>
</compile_context>

<pallas_src>
import functools

import numpy as np
import jax
import jax.numpy as jnp
from jax import lax
from jax.experimental import pallas as pl
from jax.experimental.pallas import tpu as pltpu


# --------------------------------------------------------------------------------------
# Fused kernel: forward Kalman filter + RTS smoother (precomputed gains, scalar SMEM path)
#               + lane-dense one-hot probability rows written to a VMEM output.
# --------------------------------------------------------------------------------------
def _kalman_rts_onehot_kernel(preds_ref, k0_ref, k1_ref, c00_ref, c01_ref, c10_ref, c11_ref,
                              smoothed_ref, probs_ref, xf0, xf1,
                              *, n, dt, dim_pad, x0_init, x1_init, unroll):
    # Hoisted loop-invariant lane iota (one (1, dim_pad) vreg row).
    lane_iota = lax.broadcasted_iota(jnp.int32, (1, dim_pad), 1)

    def write_onehot_row(k, val):
        # torch: probs[i, int(x)] = 1 (truncation toward zero). Out-of-range idx -> all-zero row.
        idx_vec = jnp.full((1, dim_pad), val, dtype=jnp.float32).astype(jnp.int32)
        probs_ref[k] = (lane_iota == idx_vec).astype(jnp.float32)

    # ---------------- forward filter (predict -> update), gains precomputed on host ------------
    def fwd_body(i, carry):
        x0, x1 = carry
        x0p = x0 + dt * x1                      # x <- F x  with F = [[1, dt], [0, 1]]
        y = preds_ref[i] - x0p                  # innovation, H = [1, 0]
        nx0 = x0p + k0_ref[i] * y               # x <- x + K y
        nx1 = x1 + k1_ref[i] * y
        xf0[i] = nx0
        xf1[i] = nx1
        return (nx0, nx1)

    x_last = lax.fori_loop(0, n, fwd_body,
                           (jnp.float32(x0_init), jnp.float32(x1_init)),
                           unroll=unroll)

    smoothed_ref[n - 1] = x_last[0]
    write_onehot_row(n - 1, x_last[0])

    # ---------------- backward RTS smoother: x_s[k] = x_f[k] + C_k (x_s[k+1] - F x_f[k]) -------
    def bwd_body(j, carry):
        xs0, xs1 = carry
        k = n - 2 - j
        x0 = xf0[k]
        x1 = xf1[k]
        dx0 = xs0 - (x0 + dt * x1)
        dx1 = xs1 - x1
        ns0 = x0 + c00_ref[k] * dx0 + c01_ref[k] * dx1
        ns1 = x1 + c10_ref[k] * dx0 + c11_ref[k] * dx1
        smoothed_ref[k] = ns0
        write_onehot_row(k, ns0)
        return (ns0, ns1)

    lax.fori_loop(0, n - 1, bwd_body, x_last, unroll=unroll)


# --------------------------------------------------------------------------------------
# Module wrapper (host-side float64 gain precompute + plain-JAX glue)
# --------------------------------------------------------------------------------------
class KalmanSmoothing:
    def __init__(self, dim, step_size=8, noise=2, Q=1e-4, return_probs=True, uncert='std'):
        self.dim = dim
        self.return_probs = return_probs
        self.uncert = uncert
        self.dt = float(step_size)
        self.r = float(noise)
        var = float(Q)
        dt = self.dt
        # Q_discrete_white_noise(dim=2, dt, var)
        self.q00 = 0.25 * dt ** 4 * var
        self.q01 = 0.5 * dt ** 3 * var
        self.q11 = dt ** 2 * var
        self.x_init = (0.5, 0.0)
        self.p_init = 100.0
        # bins parameter from Postprocessing.__init__ (deterministic; unused in this forward path)
        bins = np.array([-3.0 / dim] + list(np.linspace(0, 1, dim - 1)) + [1.0 + 3.0 / dim])
        bins = (bins[1:] + bins[:-1]) / 2.0
        self.bins = jnp.asarray(bins, dtype=jnp.float32)
        self._gain_cache = {}

    def _gains(self, n):
        """Data-independent forward gains (k0,k1) and RTS gains C (2x2 per step), float64 host."""
        if n in self._gain_cache:
            return self._gain_cache[n]
        dt, r = self.dt, self.r
        F = np.array([[1.0, dt], [0.0, 1.0]])
        Q = np.array([[self.q00, self.q01], [self.q01, self.q11]])
        I2 = np.eye(2)
        P = np.eye(2) * self.p_init
        k0 = np.zeros(n)
        k1 = np.zeros(n)
        Pf = np.zeros((n, 2, 2))
        for i in range(n):
            Pp = F @ P @ F.T + Q                      # predict covariance
            S = Pp[0, 0] + r
            K = Pp[:, 0] / S                           # H = [1, 0]
            k0[i], k1[i] = K
            IKH = I2 - np.outer(K, np.array([1.0, 0.0]))
            P = IKH @ Pp @ IKH.T + np.outer(K, K) * r  # Joseph form (filterpy semantics)
            Pf[i] = P
        C = np.zeros((n, 2, 2))
        for k in range(n - 1):
            Ppk = F @ Pf[k] @ F.T + Q
            C[k] = Pf[k] @ F.T @ np.linalg.inv(Ppk)
        gains = tuple(np.ascontiguousarray(a, dtype=np.float32)
                      for a in (k0, k1, C[:, 0, 0], C[:, 0, 1], C[:, 1, 0], C[:, 1, 1]))
        self._gain_cache[n] = gains
        return gains

    def _smooth_and_onehot(self, preds):
        n = preds.shape[0]
        dim_pad = ((self.dim + 127) // 128) * 128       # lane-dense one-hot output
        unroll = True if n <= 128 else 4
        gains = self._gains(n)
        kernel = functools.partial(
            _kalman_rts_onehot_kernel, n=n, dt=self.dt, dim_pad=dim_pad,
            x0_init=self.x_init[0], x1_init=self.x_init[1], unroll=unroll)
        smem = pltpu.MemorySpace.SMEM
        smoothed, probs_pad = pl.pallas_call(
            kernel,
            out_shape=(jax.ShapeDtypeStruct((n,), jnp.float32),
                       jax.ShapeDtypeStruct((n, 1, dim_pad), jnp.float32)),
            in_specs=[pl.BlockSpec(memory_space=smem) for _ in range(7)],
            out_specs=(pl.BlockSpec(memory_space=smem),
                       pl.BlockSpec(memory_space=pltpu.MemorySpace.VMEM)),
            scratch_shapes=[pltpu.SMEM((n,), jnp.float32),     # xf0 (distinct objects)
                            pltpu.SMEM((n,), jnp.float32)],    # xf1
        )(preds.astype(jnp.float32), *(jnp.asarray(g) for g in gains))
        probs = probs_pad.reshape(n, dim_pad)
        if dim_pad != self.dim:
            probs = probs[:, :self.dim]
        return smoothed, probs

    def __call__(self, probs, preds):
        # matches torch KalmanSmoothing.forward: input `probs` is ignored and replaced by one-hot.
        smoothed, probs_onehot = self._smooth_and_onehot(preds)
        uncertainty = jnp.zeros((preds.shape[0],), jnp.float32)   # torch.zeros(len(preds))
        if self.return_probs:
            return smoothed, uncertainty, probs_onehot
        return smoothed, uncertainty


# --------------------------------------------------------------------------------------
# float64 numpy reference of the filterpy algorithm (sanity check only)
# --------------------------------------------------------------------------------------
def _reference_smooth(zs, dt, r, q00, q01, q11, x_init=(0.5, 0.0), p_init=100.0):
    F = np.array([[1.0, dt], [0.0, 1.0]])
    H = np.array([[1.0, 0.0]])
    Q = np.array([[q00, q01], [q01, q11]])
    I = np.eye(2)
    x = np.array(x_init, dtype=np.float64)
    P = np.eye(2) * p_init
    n = len(zs)
    xs = np.zeros((n, 2))
    Ps = np.zeros((n, 2, 2))
    for i in range(n):
        x = F @ x
        P = F @ P @ F.T + Q
        y = zs[i] - (H @ x)[0]
        S = (H @ P @ H.T)[0, 0] + r
        K = (P @ H.T).reshape(2) / S
        x = x + K * y
        IKH = I - np.outer(K, H.reshape(2))
        P = IKH @ P @ IKH.T + np.outer(K, K) * r
        xs[i] = x
        Ps[i] = P
    xsm = xs.copy()
    for k in range(n - 2, -1, -1):
        Pp = F @ Ps[k] @ F.T + Q
        Kk = Ps[k] @ F.T @ np.linalg.inv(Pp)
        xsm[k] = xs[k] + Kk @ (xsm[k + 1] - F @ xs[k])
    return xsm[:, 0]


if __name__ == "__main__":
    key = jax.random.PRNGKey(0)
    N, DIM = 8, 64
    k1, k2 = jax.random.split(key)
    probs_in = jax.nn.softmax(jax.random.normal(k1, (N, DIM)), axis=-1).astype(jnp.float32)
    preds = jax.random.uniform(k2, (N,), dtype=jnp.float32)

    model = KalmanSmoothing(dim=DIM, step_size=8, noise=2, Q=1e-4, return_probs=True)
    smoothed, uncertainty, probs_out = model(probs_in, preds)
    jax.block_until_ready((smoothed, uncertainty, probs_out))

    # sanity: compare against float64 numpy implementation of filterpy's filter + RTS smoother
    ref = _reference_smooth(np.asarray(preds, dtype=np.float64),
                            model.dt, model.r, model.q00, model.q01, model.q11)
    assert np.allclose(np.asarray(smoothed), ref, atol=1e-3, rtol=1e-3)
    assert smoothed.shape == (N,) and smoothed.dtype == jnp.float32
    assert uncertainty.shape == (N,) and np.allclose(np.asarray(uncertainty), 0.0)
    assert probs_out.shape == (N, DIM) and probs_out.dtype == jnp.float32

    # one-hot consistency with the kernel's own smoothed output (torch: probs[i, int(x)] = 1)
    sm_np = np.asarray(smoothed)
    expected = np.zeros((N, DIM), np.float32)
    for i, x in enumerate(sm_np):
        ix = int(x)
        if 0 <= ix < DIM:
            expected[i, ix] = 1.0
    assert np.array_equal(np.asarray(probs_out), expected)

    print("KERNEL_OK")
</pallas_src>

<mosaic_0001>
module attributes {stable_mosaic.version = 11 : i64} {
  func.func @_kalman_rts_onehot_kernel(%arg0: memref<8xf32, #tpu.memory_space<smem>>, %arg1: memref<8xf32, #tpu.memory_space<smem>>, %arg2: memref<8xf32, #tpu.memory_space<smem>>, %arg3: memref<8xf32, #tpu.memory_space<smem>>, %arg4: memref<8xf32, #tpu.memory_space<smem>>, %arg5: memref<8xf32, #tpu.memory_space<smem>>, %arg6: memref<8xf32, #tpu.memory_space<smem>>, %arg7: memref<8xf32, #tpu.memory_space<smem>>, %arg8: memref<8x1x128xf32, #tpu.memory_space<vmem>>, %arg9: memref<8xf32, #tpu.memory_space<smem>>, %arg10: memref<8xf32, #tpu.memory_space<smem>>) attributes {dimension_semantics = [], scalar_prefetch = 0 : i64, scratch_operands = 2 : i64, tpu.core_type = #tpu.core_type<tc>} {
    %0 = tpu.iota {dimensions = array<i32: 1>} : vector<1x128xi32>
    %cst = arith.constant 5.000000e-01 : f32
    %cst_0 = arith.constant 0.000000e+00 : f32
    %c0_i32 = arith.constant 0 : i32
    %cst_1 = arith.constant 8.000000e+00 : f32
    %1 = arith.mulf %cst_1, %cst_0 : f32
    %2 = arith.addf %cst, %1 : f32
    %3 = arith.index_cast %c0_i32 : i32 to index
    %4 = memref.load %arg0[%3] : memref<8xf32, #tpu.memory_space<smem>>
    %5 = arith.subf %4, %2 : f32
    %6 = arith.index_cast %c0_i32 : i32 to index
    %7 = memref.load %arg1[%6] : memref<8xf32, #tpu.memory_space<smem>>
    %8 = arith.mulf %7, %5 : f32
    %9 = arith.addf %2, %8 : f32
    %10 = arith.index_cast %c0_i32 : i32 to index
    %11 = memref.load %arg2[%10] : memref<8xf32, #tpu.memory_space<smem>>
    %12 = arith.mulf %11, %5 : f32
    %13 = arith.addf %cst_0, %12 : f32
    %14 = arith.index_cast %c0_i32 : i32 to index
    %15 = memref.load %arg9[%14] : memref<8xf32, #tpu.memory_space<smem>>
    memref.store %9, %arg9[%14] : memref<8xf32, #tpu.memory_space<smem>>
    %16 = arith.index_cast %c0_i32 : i32 to index
    %17 = memref.load %arg10[%16] : memref<8xf32, #tpu.memory_space<smem>>
    memref.store %13, %arg10[%16] : memref<8xf32, #tpu.memory_space<smem>>
    %c1_i32 = arith.constant 1 : i32
    %cst_2 = arith.constant 8.000000e+00 : f32
    %18 = arith.mulf %cst_2, %13 : f32
    %19 = arith.addf %9, %18 : f32
    %20 = arith.index_cast %c1_i32 : i32 to index
    %21 = memref.load %arg0[%20] : memref<8xf32, #tpu.memory_space<smem>>
    %22 = arith.subf %21, %19 : f32
    %23 = arith.index_cast %c1_i32 : i32 to index
    %24 = memref.load %arg1[%23] : memref<8xf32, #tpu.memory_space<smem>>
    %25 = arith.mulf %24, %22 : f32
    %26 = arith.addf %19, %25 : f32
    %27 = arith.index_cast %c1_i32 : i32 to index
    %28 = memref.load %arg2[%27] : memref<8xf32, #tpu.memory_space<smem>>
    %29 = arith.mulf %28, %22 : f32
    %30 = arith.addf %13, %29 : f32
    %31 = arith.index_cast %c1_i32 : i32 to index
    %32 = memref.load %arg9[%31] : memref<8xf32, #tpu.memory_space<smem>>
    memref.store %26, %arg9[%31] : memref<8xf32, #tpu.memory_space<smem>>
    %33 = arith.index_cast %c1_i32 : i32 to index
    %34 = memref.load %arg10[%33] : memref<8xf32, #tpu.memory_space<smem>>
    memref.store %30, %arg10[%33] : memref<8xf32, #tpu.memory_space<smem>>
    %c2_i32 = arith.constant 2 : i32
    %cst_3 = arith.constant 8.000000e+00 : f32
    %35 = arith.mulf %cst_3, %30 : f32
    %36 = arith.addf %26, %35 : f32
    %37 = arith.index_cast %c2_i32 : i32 to index
    %38 = memref.load %arg0[%37] : memref<8xf32, #tpu.memory_space<smem>>
    %39 = arith.subf %38, %36 : f32
    %40 = arith.index_cast %c2_i32 : i32 to index
    %41 = memref.load %arg1[%40] : memref<8xf32, #tpu.memory_space<smem>>
    %42 = arith.mulf %41, %39 : f32
    %43 = arith.addf %36, %42 : f32
    %44 = arith.index_cast %c2_i32 : i32 to index
    %45 = memref.load %arg2[%44] : memref<8xf32, #tpu.memory_space<smem>>
    %46 = arith.mulf %45, %39 : f32
    %47 = arith.addf %30, %46 : f32
    %48 = arith.index_cast %c2_i32 : i32 to index
    %49 = memref.load %arg9[%48] : memref<8xf32, #tpu.memory_space<smem>>
    memref.store %43, %arg9[%48] : memref<8xf32, #tpu.memory_space<smem>>
    %50 = arith.index_cast %c2_i32 : i32 to index
    %51 = memref.load %arg10[%50] : memref<8xf32, #tpu.memory_space<smem>>
    memref.store %47, %arg10[%50] : memref<8xf32, #tpu.memory_space<smem>>
    %c3_i32 = arith.constant 3 : i32
    %cst_4 = arith.constant 8.000000e+00 : f32
    %52 = arith.mulf %cst_4, %47 : f32
    %53 = arith.addf %43, %52 : f32
    %54 = arith.index_cast %c3_i32 : i32 to index
    %55 = memref.load %arg0[%54] : memref<8xf32, #tpu.memory_space<smem>>
    %56 = arith.subf %55, %53 : f32
    %57 = arith.index_cast %c3_i32 : i32 to index
    %58 = memref.load %arg1[%57] : memref<8xf32, #tpu.memory_space<smem>>
    %59 = arith.mulf %58, %56 : f32
    %60 = arith.addf %53, %59 : f32
    %61 = arith.index_cast %c3_i32 : i32 to index
    %62 = memref.load %arg2[%61] : memref<8xf32, #tpu.memory_space<smem>>
    %63 = arith.mulf %62, %56 : f32
    %64 = arith.addf %47, %63 : f32
    %65 = arith.index_cast %c3_i32 : i32 to index
    %66 = memref.load %arg9[%65] : memref<8xf32, #tpu.memory_space<smem>>
    memref.store %60, %arg9[%65] : memref<8xf32, #tpu.memory_space<smem>>
    %67 = arith.index_cast %c3_i32 : i32 to index
    %68 = memref.load %arg10[%67] : memref<8xf32, #tpu.memory_space<smem>>
    memref.store %64, %arg10[%67] : memref<8xf32, #tpu.memory_space<smem>>
    %c4_i32 = arith.constant 4 : i32
    %cst_5 = arith.constant 8.000000e+00 : f32
    %69 = arith.mulf %cst_5, %64 : f32
    %70 = arith.addf %60, %69 : f32
    %71 = arith.index_cast %c4_i32 : i32 to index
    %72 = memref.load %arg0[%71] : memref<8xf32, #tpu.memory_space<smem>>
    %73 = arith.subf %72, %70 : f32
    %74 = arith.index_cast %c4_i32 : i32 to index
    %75 = memref.load %arg1[%74] : memref<8xf32, #tpu.memory_space<smem>>
    %76 = arith.mulf %75, %73 : f32
    %77 = arith.addf %70, %76 : f32
    %78 = arith.index_cast %c4_i32 : i32 to index
    %79 = memref.load %arg2[%78] : memref<8xf32, #tpu.memory_space<smem>>
    %80 = arith.mulf %79, %73 : f32
    %81 = arith.addf %64, %80 : f32
    %82 = arith.index_cast %c4_i32 : i32 to index
    %83 = memref.load %arg9[%82] : memref<8xf32, #tpu.memory_space<smem>>
    memref.store %77, %arg9[%82] : memref<8xf32, #tpu.memory_space<smem>>
    %84 = arith.index_cast %c4_i32 : i32 to index
    %85 = memref.load %arg10[%84] : memref<8xf32, #tpu.memory_space<smem>>
    memref.store %81, %arg10[%84] : memref<8xf32, #tpu.memory_space<smem>>
    %c5_i32 = arith.constant 5 : i32
    %cst_6 = arith.constant 8.000000e+00 : f32
    %86 = arith.mulf %cst_6, %81 : f32
    %87 = arith.addf %77, %86 : f32
    %88 = arith.index_cast %c5_i32 : i32 to index
    %89 = memref.load %arg0[%88] : memref<8xf32, #tpu.memory_space<smem>>
    %90 = arith.subf %89, %87 : f32
    %91 = arith.index_cast %c5_i32 : i32 to index
    %92 = memref.load %arg1[%91] : memref<8xf32, #tpu.memory_space<smem>>
    %93 = arith.mulf %92, %90 : f32
    %94 = arith.addf %87, %93 : f32
    %95 = arith.index_cast %c5_i32 : i32 to index
    %96 = memref.load %arg2[%95] : memref<8xf32, #tpu.memory_space<smem>>
    %97 = arith.mulf %96, %90 : f32
    %98 = arith.addf %81, %97 : f32
    %99 = arith.index_cast %c5_i32 : i32 to index
    %100 = memref.load %arg9[%99] : memref<8xf32, #tpu.memory_space<smem>>
    memref.store %94, %arg9[%99] : memref<8xf32, #tpu.memory_space<smem>>
    %101 = arith.index_cast %c5_i32 : i32 to index
    %102 = memref.load %arg10[%101] : memref<8xf32, #tpu.memory_space<smem>>
    memref.store %98, %arg10[%101] : memref<8xf32, #tpu.memory_space<smem>>
    %c6_i32 = arith.constant 6 : i32
    %cst_7 = arith.constant 8.000000e+00 : f32
    %103 = arith.mulf %cst_7, %98 : f32
    %104 = arith.addf %94, %103 : f32
    %105 = arith.index_cast %c6_i32 : i32 to index
    %106 = memref.load %arg0[%105] : memref<8xf32, #tpu.memory_space<smem>>
    %107 = arith.subf %106, %104 : f32
    %108 = arith.index_cast %c6_i32 : i32 to index
    %109 = memref.load %arg1[%108] : memref<8xf32, #tpu.memory_space<smem>>
    %110 = arith.mulf %109, %107 : f32
    %111 = arith.addf %104, %110 : f32
    %112 = arith.index_cast %c6_i32 : i32 to index
    %113 = memref.load %arg2[%112] : memref<8xf32, #tpu.memory_space<smem>>
    %114 = arith.mulf %113, %107 : f32
    %115 = arith.addf %98, %114 : f32
    %116 = arith.index_cast %c6_i32 : i32 to index
    %117 = memref.load %arg9[%116] : memref<8xf32, #tpu.memory_space<smem>>
    memref.store %111, %arg9[%116] : memref<8xf32, #tpu.memory_space<smem>>
    %118 = arith.index_cast %c6_i32 : i32 to index
    %119 = memref.load %arg10[%118] : memref<8xf32, #tpu.memory_space<smem>>
    memref.store %115, %arg10[%118] : memref<8xf32, #tpu.memory_space<smem>>
    %c7_i32 = arith.constant 7 : i32
    %cst_8 = arith.constant 8.000000e+00 : f32
    %120 = arith.mulf %cst_8, %115 : f32
    %121 = arith.addf %111, %120 : f32
    %122 = arith.index_cast %c7_i32 : i32 to index
    %123 = memref.load %arg0[%122] : memref<8xf32, #tpu.memory_space<smem>>
    %124 = arith.subf %123, %121 : f32
    %125 = arith.index_cast %c7_i32 : i32 to index
    %126 = memref.load %arg1[%125] : memref<8xf32, #tpu.memory_space<smem>>
    %127 = arith.mulf %126, %124 : f32
    %128 = arith.addf %121, %127 : f32
    %129 = arith.index_cast %c7_i32 : i32 to index
    %130 = memref.load %arg2[%129] : memref<8xf32, #tpu.memory_space<smem>>
    %131 = arith.mulf %130, %124 : f32
    %132 = arith.addf %115, %131 : f32
    %133 = arith.index_cast %c7_i32 : i32 to index
    %134 = memref.load %arg9[%133] : memref<8xf32, #tpu.memory_space<smem>>
    memref.store %128, %arg9[%133] : memref<8xf32, #tpu.memory_space<smem>>
    %135 = arith.index_cast %c7_i32 : i32 to index
    %136 = memref.load %arg10[%135] : memref<8xf32, #tpu.memory_space<smem>>
    memref.store %132, %arg10[%135] : memref<8xf32, #tpu.memory_space<smem>>
    %c8_i32 = arith.constant 8 : i32
    %c7 = arith.constant 7 : index
    %137 = memref.load %arg7[%c7] : memref<8xf32, #tpu.memory_space<smem>>
    memref.store %128, %arg7[%c7] : memref<8xf32, #tpu.memory_space<smem>>
    %138 = vector.broadcast %128 : f32 to vector<1x128xf32>
    %139 = arith.fptosi %138 : vector<1x128xf32> to vector<1x128xi32>
    %140 = arith.cmpi eq, %0, %139 : vector<1x128xi32>
    %141 = arith.extui %140 : vector<1x128xi1> to vector<1x128xi32>
    %142 = arith.sitofp %141 : vector<1x128xi32> to vector<1x128xf32>
    %c7_9 = arith.constant 7 : index
    %c0 = arith.constant 0 : index
    %c0_10 = arith.constant 0 : index
    %143 = vector.load %arg8[%c7_9, %c0, %c0_10] : memref<8x1x128xf32, #tpu.memory_space<vmem>>, vector<1x1x128xf32>
    %144 = vector.shape_cast %143 : vector<1x1x128xf32> to vector<1x128xf32>
    %145 = vector.shape_cast %142 : vector<1x128xf32> to vector<1x1x128xf32>
    tpu.vector_store %arg8[%c7_9, %c0, %c0_10], %145 {strides = array<i32>} : memref<8x1x128xf32, #tpu.memory_space<vmem>>, vector<1x1x128xf32>,
    %c0_i32_11 = arith.constant 0 : i32
    %c6_i32_12 = arith.constant 6 : i32
    %146 = arith.subi %c6_i32_12, %c0_i32_11 : i32
    %147 = arith.index_cast %146 : i32 to index
    %148 = memref.load %arg9[%147] : memref<8xf32, #tpu.memory_space<smem>>
    %149 = arith.index_cast %146 : i32 to index
    %150 = memref.load %arg10[%149] : memref<8xf32, #tpu.memory_space<smem>>
    %cst_13 = arith.constant 8.000000e+00 : f32
    %151 = arith.mulf %cst_13, %150 : f32
    %152 = arith.addf %148, %151 : f32
    %153 = arith.subf %128, %152 : f32
    %154 = arith.subf %132, %150 : f32
    %155 = arith.index_cast %146 : i32 to index
    %156 = memref.load %arg3[%155] : memref<8xf32, #tpu.memory_space<smem>>
    %157 = arith.mulf %156, %153 : f32
    %158 = arith.addf %148, %157 : f32
    %159 = arith.index_cast %146 : i32 to index
    %160 = memref.load %arg4[%159] : memref<8xf32, #tpu.memory_space<smem>>
    %161 = arith.mulf %160, %154 : f32
    %162 = arith.addf %158, %161 : f32
    %163 = arith.index_cast %146 : i32 to index
    %164 = memref.load %arg5[%163] : memref<8xf32, #tpu.memory_space<smem>>
    %165 = arith.mulf %164, %153 : f32
    %166 = arith.addf %150, %165 : f32
    %167 = arith.index_cast %146 : i32 to index
    %168 = memref.load %arg6[%167] : memref<8xf32, #tpu.memory_space<smem>>
    %169 = arith.mulf %168, %154 : f32
    %170 = arith.addf %166, %169 : f32
    %171 = arith.index_cast %146 : i32 to index
    %172 = memref.load %arg7[%171] : memref<8xf32, #tpu.memory_space<smem>>
    memref.store %162, %arg7[%171] : memref<8xf32, #tpu.memory_space<smem>>
    %173 = vector.broadcast %162 : f32 to vector<1x128xf32>
    %174 = arith.fptosi %173 : vector<1x128xf32> to vector<1x128xi32>
    %175 = arith.cmpi eq, %0, %174 : vector<1x128xi32>
    %176 = arith.extui %175 : vector<1x128xi1> to vector<1x128xi32>
    %177 = arith.sitofp %176 : vector<1x128xi32> to vector<1x128xf32>
    %178 = arith.index_cast %146 : i32 to index
    %c0_14 = arith.constant 0 : index
    %c0_15 = arith.constant 0 : index
    %179 = vector.load %arg8[%178, %c0_14, %c0_15] : memref<8x1x128xf32, #tpu.memory_space<vmem>>, vector<1x1x128xf32>
    %180 = vector.shape_cast %179 : vector<1x1x128xf32> to vector<1x128xf32>
    %181 = vector.shape_cast %177 : vector<1x128xf32> to vector<1x1x128xf32>
    tpu.vector_store %arg8[%178, %c0_14, %c0_15], %181 {strides = array<i32>} : memref<8x1x128xf32, #tpu.memory_space<vmem>>, vector<1x1x128xf32>,
    %c1_i32_16 = arith.constant 1 : i32
    %c6_i32_17 = arith.constant 6 : i32
    %182 = arith.subi %c6_i32_17, %c1_i32_16 : i32
    %183 = arith.index_cast %182 : i32 to index
    %184 = memref.load %arg9[%183] : memref<8xf32, #tpu.memory_space<smem>>
    %185 = arith.index_cast %182 : i32 to index
    %186 = memref.load %arg10[%185] : memref<8xf32, #tpu.memory_space<smem>>
    %cst_18 = arith.constant 8.000000e+00 : f32
    %187 = arith.mulf %cst_18, %186 : f32
    %188 = arith.addf %184, %187 : f32
    %189 = arith.subf %162, %188 : f32
    %190 = arith.subf %170, %186 : f32
    %191 = arith.index_cast %182 : i32 to index
    %192 = memref.load %arg3[%191] : memref<8xf32, #tpu.memory_space<smem>>
    %193 = arith.mulf %192, %189 : f32
    %194 = arith.addf %184, %193 : f32
    %195 = arith.index_cast %182 : i32 to index
    %196 = memref.load %arg4[%195] : memref<8xf32, #tpu.memory_space<smem>>
    %197 = arith.mulf %196, %190 : f32
    %198 = arith.addf %194, %197 : f32
    %199 = arith.index_cast %182 : i32 to index
    %200 = memref.load %arg5[%199] : memref<8xf32, #tpu.memory_space<smem>>
    %201 = arith.mulf %200, %189 : f32
    %202 = arith.addf %186, %201 : f32
    %203 = arith.index_cast %182 : i32 to index
    %204 = memref.load %arg6[%203] : memref<8xf32, #tpu.memory_space<smem>>
    %205 = arith.mulf %204, %190 : f32
    %206 = arith.addf %202, %205 : f32
    %207 = arith.index_cast %182 : i32 to index
    %208 = memref.load %arg7[%207] : memref<8xf32, #tpu.memory_space<smem>>
    memref.store %198, %arg7[%207] : memref<8xf32, #tpu.memory_space<smem>>
    %209 = vector.broadcast %198 : f32 to vector<1x128xf32>
    %210 = arith.fptosi %209 : vector<1x128xf32> to vector<1x128xi32>
    %211 = arith.cmpi eq, %0, %210 : vector<1x128xi32>
    %212 = arith.extui %211 : vector<1x128xi1> to vector<1x128xi32>
    %213 = arith.sitofp %212 : vector<1x128xi32> to vector<1x128xf32>
    %214 = arith.index_cast %182 : i32 to index
    %c0_19 = arith.constant 0 : index
    %c0_20 = arith.constant 0 : index
    %215 = vector.load %arg8[%214, %c0_19, %c0_20] : memref<8x1x128xf32, #tpu.memory_space<vmem>>, vector<1x1x128xf32>
    %216 = vector.shape_cast %215 : vector<1x1x128xf32> to vector<1x128xf32>
    %217 = vector.shape_cast %213 : vector<1x128xf32> to vector<1x1x128xf32>
    tpu.vector_store %arg8[%214, %c0_19, %c0_20], %217 {strides = array<i32>} : memref<8x1x128xf32, #tpu.memory_space<vmem>>, vector<1x1x128xf32>,
    %c2_i32_21 = arith.constant 2 : i32
    %c6_i32_22 = arith.constant 6 : i32
    %218 = arith.subi %c6_i32_22, %c2_i32_21 : i32
    %219 = arith.index_cast %218 : i32 to index
    %220 = memref.load %arg9[%219] : memref<8xf32, #tpu.memory_space<smem>>
    %221 = arith.index_cast %218 : i32 to index
    %222 = memref.load %arg10[%221] : memref<8xf32, #tpu.memory_space<smem>>
    %cst_23 = arith.constant 8.000000e+00 : f32
    %223 = arith.mulf %cst_23, %222 : f32
    %224 = arith.addf %220, %223 : f32
    %225 = arith.subf %198, %224 : f32
    %226 = arith.subf %206, %222 : f32
    %227 = arith.index_cast %218 : i32 to index
    %228 = memref.load %arg3[%227] : memref<8xf32, #tpu.memory_space<smem>>
    %229 = arith.mulf %228, %225 : f32
    %230 = arith.addf %220, %229 : f32
    %231 = arith.index_cast %218 : i32 to index
    %232 = memref.load %arg4[%231] : memref<8xf32, #tpu.memory_space<smem>>
    %233 = arith.mulf %232, %226 : f32
    %234 = arith.addf %230, %233 : f32
    %235 = arith.index_cast %218 : i32 to index
    %236 = memref.load %arg5[%235] : memref<8xf32, #tpu.memory_space<smem>>
    %237 = arith.mulf %236, %225 : f32
    %238 = arith.addf %222, %237 : f32
    %239 = arith.index_cast %218 : i32 to index
    %240 = memref.load %arg6[%239] : memref<8xf32, #tpu.memory_space<smem>>
    %241 = arith.mulf %240, %226 : f32
    %242 = arith.addf %238, %241 : f32
    %243 = arith.index_cast %218 : i32 to index
    %244 = memref.load %arg7[%243] : memref<8xf32, #tpu.memory_space<smem>>
    memref.store %234, %arg7[%243] : memref<8xf32, #tpu.memory_space<smem>>
    %245 = vector.broadcast %234 : f32 to vector<1x128xf32>
    %246 = arith.fptosi %245 : vector<1x128xf32> to vector<1x128xi32>
    %247 = arith.cmpi eq, %0, %246 : vector<1x128xi32>
    %248 = arith.extui %247 : vector<1x128xi1> to vector<1x128xi32>
    %249 = arith.sitofp %248 : vector<1x128xi32> to vector<1x128xf32>
    %250 = arith.index_cast %218 : i32 to index
    %c0_24 = arith.constant 0 : index
    %c0_25 = arith.constant 0 : index
    %251 = vector.load %arg8[%250, %c0_24, %c0_25] : memref<8x1x128xf32, #tpu.memory_space<vmem>>, vector<1x1x128xf32>
    %252 = vector.shape_cast %251 : vector<1x1x128xf32> to vector<1x128xf32>
    %253 = vector.shape_cast %249 : vector<1x128xf32> to vector<1x1x128xf32>
    tpu.vector_store %arg8[%250, %c0_24, %c0_25], %253 {strides = array<i32>} : memref<8x1x128xf32, #tpu.memory_space<vmem>>, vector<1x1x128xf32>,
    %c3_i32_26 = arith.constant 3 : i32
    %c6_i32_27 = arith.constant 6 : i32
    %254 = arith.subi %c6_i32_27, %c3_i32_26 : i32
    %255 = arith.index_cast %254 : i32 to index
    %256 = memref.load %arg9[%255] : memref<8xf32, #tpu.memory_space<smem>>
    %257 = arith.index_cast %254 : i32 to index
    %258 = memref.load %arg10[%257] : memref<8xf32, #tpu.memory_space<smem>>
    %cst_28 = arith.constant 8.000000e+00 : f32
    %259 = arith.mulf %cst_28, %258 : f32
    %260 = arith.addf %256, %259 : f32
    %261 = arith.subf %234, %260 : f32
    %262 = arith.subf %242, %258 : f32
    %263 = arith.index_cast %254 : i32 to index
    %264 = memref.load %arg3[%263] : memref<8xf32, #tpu.memory_space<smem>>
    %265 = arith.mulf %264, %261 : f32
    %266 = arith.addf %256, %265 : f32
    %267 = arith.index_cast %254 : i32 to index
    %268 = memref.load %arg4[%267] : memref<8xf32, #tpu.memory_space<smem>>
    %269 = arith.mulf %268, %262 : f32
    %270 = arith.addf %266, %269 : f32
    %271 = arith.index_cast %254 : i32 to index
    %272 = memref.load %arg5[%271] : memref<8xf32, #tpu.memory_space<smem>>
    %273 = arith.mulf %272, %261 : f32
    %274 = arith.addf %258, %273 : f32
    %275 = arith.index_cast %254 : i32 to index
    %276 = memref.load %arg6[%275] : memref<8xf32, #tpu.memory_space<smem>>
    %277 = arith.mulf %276, %262 : f32
    %278 = arith.addf %274, %277 : f32
    %279 = arith.index_cast %254 : i32 to index
    %280 = memref.load %arg7[%279] : memref<8xf32, #tpu.memory_space<smem>>
    memref.store %270, %arg7[%279] : memref<8xf32, #tpu.memory_space<smem>>
    %281 = vector.broadcast %270 : f32 to vector<1x128xf32>
    %282 = arith.fptosi %281 : vector<1x128xf32> to vector<1x128xi32>
    %283 = arith.cmpi eq, %0, %282 : vector<1x128xi32>
    %284 = arith.extui %283 : vector<1x128xi1> to vector<1x128xi32>
    %285 = arith.sitofp %284 : vector<1x128xi32> to vector<1x128xf32>
    %286 = arith.index_cast %254 : i32 to index
    %c0_29 = arith.constant 0 : index
    %c0_30 = arith.constant 0 : index
    %287 = vector.load %arg8[%286, %c0_29, %c0_30] : memref<8x1x128xf32, #tpu.memory_space<vmem>>, vector<1x1x128xf32>
    %288 = vector.shape_cast %287 : vector<1x1x128xf32> to vector<1x128xf32>
    %289 = vector.shape_cast %285 : vector<1x128xf32> to vector<1x1x128xf32>
    tpu.vector_store %arg8[%286, %c0_29, %c0_30], %289 {strides = array<i32>} : memref<8x1x128xf32, #tpu.memory_space<vmem>>, vector<1x1x128xf32>,
    %c4_i32_31 = arith.constant 4 : i32
    %c6_i32_32 = arith.constant 6 : i32
    %290 = arith.subi %c6_i32_32, %c4_i32_31 : i32
    %291 = arith.index_cast %290 : i32 to index
    %292 = memref.load %arg9[%291] : memref<8xf32, #tpu.memory_space<smem>>
    %293 = arith.index_cast %290 : i32 to index
    %294 = memref.load %arg10[%293] : memref<8xf32, #tpu.memory_space<smem>>
    %cst_33 = arith.constant 8.000000e+00 : f32
    %295 = arith.mulf %cst_33, %294 : f32
    %296 = arith.addf %292, %295 : f32
    %297 = arith.subf %270, %296 : f32
    %298 = arith.subf %278, %294 : f32
    %299 = arith.index_cast %290 : i32 to index
    %300 = memref.load %arg3[%299] : memref<8xf32, #tpu.memory_space<smem>>
    %301 = arith.mulf %300, %297 : f32
    %302 = arith.addf %292, %301 : f32
    %303 = arith.index_cast %290 : i32 to index
    %304 = memref.load %arg4[%303] : memref<8xf32, #tpu.memory_space<smem>>
    %305 = arith.mulf %304, %298 : f32
    %306 = arith.addf %302, %305 : f32
    %307 = arith.index_cast %290 : i32 to index
    %308 = memref.load %arg5[%307] : memref<8xf32, #tpu.memory_space<smem>>
    %309 = arith.mulf %308, %297 : f32
    %310 = arith.addf %294, %309 : f32
    %311 = arith.index_cast %290 : i32 to index
    %312 = memref.load %arg6[%311] : memref<8xf32, #tpu.memory_space<smem>>
    %313 = arith.mulf %312, %298 : f32
    %314 = arith.addf %310, %313 : f32
    %315 = arith.index_cast %290 : i32 to index
    %316 = memref.load %arg7[%315] : memref<8xf32, #tpu.memory_space<smem>>
    memref.store %306, %arg7[%315] : memref<8xf32, #tpu.memory_space<smem>>
    %317 = vector.broadcast %306 : f32 to vector<1x128xf32>
    %318 = arith.fptosi %317 : vector<1x128xf32> to vector<1x128xi32>
    %319 = arith.cmpi eq, %0, %318 : vector<1x128xi32>
    %320 = arith.extui %319 : vector<1x128xi1> to vector<1x128xi32>
    %321 = arith.sitofp %320 : vector<1x128xi32> to vector<1x128xf32>
    %322 = arith.index_cast %290 : i32 to index
    %c0_34 = arith.constant 0 : index
    %c0_35 = arith.constant 0 : index
    %323 = vector.load %arg8[%322, %c0_34, %c0_35] : memref<8x1x128xf32, #tpu.memory_space<vmem>>, vector<1x1x128xf32>
    %324 = vector.shape_cast %323 : vector<1x1x128xf32> to vector<1x128xf32>
    %325 = vector.shape_cast %321 : vector<1x128xf32> to vector<1x1x128xf32>
    tpu.vector_store %arg8[%322, %c0_34, %c0_35], %325 {strides = array<i32>} : memref<8x1x128xf32, #tpu.memory_space<vmem>>, vector<1x1x128xf32>,
    %c5_i32_36 = arith.constant 5 : i32
    %c6_i32_37 = arith.constant 6 : i32
    %326 = arith.subi %c6_i32_37, %c5_i32_36 : i32
    %327 = arith.index_cast %326 : i32 to index
    %328 = memref.load %arg9[%327] : memref<8xf32, #tpu.memory_space<smem>>
    %329 = arith.index_cast %326 : i32 to index
    %330 = memref.load %arg10[%329] : memref<8xf32, #tpu.memory_space<smem>>
    %cst_38 = arith.constant 8.000000e+00 : f32
    %331 = arith.mulf %cst_38, %330 : f32
    %332 = arith.addf %328, %331 : f32
    %333 = arith.subf %306, %332 : f32
    %334 = arith.subf %314, %330 : f32
    %335 = arith.index_cast %326 : i32 to index
    %336 = memref.load %arg3[%335] : memref<8xf32, #tpu.memory_space<smem>>
    %337 = arith.mulf %336, %333 : f32
    %338 = arith.addf %328, %337 : f32
    %339 = arith.index_cast %326 : i32 to index
    %340 = memref.load %arg4[%339] : memref<8xf32, #tpu.memory_space<smem>>
    %341 = arith.mulf %340, %334 : f32
    %342 = arith.addf %338, %341 : f32
    %343 = arith.index_cast %326 : i32 to index
    %344 = memref.load %arg5[%343] : memref<8xf32, #tpu.memory_space<smem>>
    %345 = arith.mulf %344, %333 : f32
    %346 = arith.addf %330, %345 : f32
    %347 = arith.index_cast %326 : i32 to index
    %348 = memref.load %arg6[%347] : memref<8xf32, #tpu.memory_space<smem>>
    %349 = arith.mulf %348, %334 : f32
    %350 = arith.addf %346, %349 : f32
    %351 = arith.index_cast %326 : i32 to index
    %352 = memref.load %arg7[%351] : memref<8xf32, #tpu.memory_space<smem>>
    memref.store %342, %arg7[%351] : memref<8xf32, #tpu.memory_space<smem>>
    %353 = vector.broadcast %342 : f32 to vector<1x128xf32>
    %354 = arith.fptosi %353 : vector<1x128xf32> to vector<1x128xi32>
    %355 = arith.cmpi eq, %0, %354 : vector<1x128xi32>
    %356 = arith.extui %355 : vector<1x128xi1> to vector<1x128xi32>
    %357 = arith.sitofp %356 : vector<1x128xi32> to vector<1x128xf32>
    %358 = arith.index_cast %326 : i32 to index
    %c0_39 = arith.constant 0 : index
    %c0_40 = arith.constant 0 : index
    %359 = vector.load %arg8[%358, %c0_39, %c0_40] : memref<8x1x128xf32, #tpu.memory_space<vmem>>, vector<1x1x128xf32>
    %360 = vector.shape_cast %359 : vector<1x1x128xf32> to vector<1x128xf32>
    %361 = vector.shape_cast %357 : vector<1x128xf32> to vector<1x1x128xf32>
    tpu.vector_store %arg8[%358, %c0_39, %c0_40], %361 {strides = array<i32>} : memref<8x1x128xf32, #tpu.memory_space<vmem>>, vector<1x1x128xf32>,
    %c6_i32_41 = arith.constant 6 : i32
    %c6_i32_42 = arith.constant 6 : i32
    %362 = arith.subi %c6_i32_42, %c6_i32_41 : i32
    %363 = arith.index_cast %362 : i32 to index
    %364 = memref.load %arg9[%363] : memref<8xf32, #tpu.memory_space<smem>>
    %365 = arith.index_cast %362 : i32 to index
    %366 = memref.load %arg10[%365] : memref<8xf32, #tpu.memory_space<smem>>
    %cst_43 = arith.constant 8.000000e+00 : f32
    %367 = arith.mulf %cst_43, %366 : f32
    %368 = arith.addf %364, %367 : f32
    %369 = arith.subf %342, %368 : f32
    %370 = arith.subf %350, %366 : f32
    %371 = arith.index_cast %362 : i32 to index
    %372 = memref.load %arg3[%371] : memref<8xf32, #tpu.memory_space<smem>>
    %373 = arith.mulf %372, %369 : f32
    %374 = arith.addf %364, %373 : f32
    %375 = arith.index_cast %362 : i32 to index
    %376 = memref.load %arg4[%375] : memref<8xf32, #tpu.memory_space<smem>>
    %377 = arith.mulf %376, %370 : f32
    %378 = arith.addf %374, %377 : f32
    %379 = arith.index_cast %362 : i32 to index
    %380 = memref.load %arg5[%379] : memref<8xf32, #tpu.memory_space<smem>>
    %381 = arith.mulf %380, %369 : f32
    %382 = arith.addf %366, %381 : f32
    %383 = arith.index_cast %362 : i32 to index
    %384 = memref.load %arg6[%383] : memref<8xf32, #tpu.memory_space<smem>>
    %385 = arith.mulf %384, %370 : f32
    %386 = arith.addf %382, %385 : f32
    %387 = arith.index_cast %362 : i32 to index
    %388 = memref.load %arg7[%387] : memref<8xf32, #tpu.memory_space<smem>>
    memref.store %378, %arg7[%387] : memref<8xf32, #tpu.memory_space<smem>>
    %389 = vector.broadcast %378 : f32 to vector<1x128xf32>
    %390 = arith.fptosi %389 : vector<1x128xf32> to vector<1x128xi32>
    %391 = arith.cmpi eq, %0, %390 : vector<1x128xi32>
    %392 = arith.extui %391 : vector<1x128xi1> to vector<1x128xi32>
    %393 = arith.sitofp %392 : vector<1x128xi32> to vector<1x128xf32>
    %394 = arith.index_cast %362 : i32 to index
    %c0_44 = arith.constant 0 : index
    %c0_45 = arith.constant 0 : index
    %395 = vector.load %arg8[%394, %c0_44, %c0_45] : memref<8x1x128xf32, #tpu.memory_space<vmem>>, vector<1x1x128xf32>
    %396 = vector.shape_cast %395 : vector<1x1x128xf32> to vector<1x128xf32>
    %397 = vector.shape_cast %393 : vector<1x128xf32> to vector<1x1x128xf32>
    tpu.vector_store %arg8[%394, %c0_44, %c0_45], %397 {strides = array<i32>} : memref<8x1x128xf32, #tpu.memory_space<vmem>>, vector<1x1x128xf32>,
    %c7_i32_46 = arith.constant 7 : i32
    return
  }
}

</mosaic_0001>

<llo_original>
// kernel: tpu_custom_call.1
$region0: #{tpu_custom_call.1}
  #allocation0 [shape = 'u32[]', space=smem, size = 0x4, offset = 0x4, fixed_abs, tag = 'smem constant byte address 0x4 - core index']
  #allocation1 [shape = 'u32[144,128]{1,0:T(1,128)}', space=vmem, size = 0x12000, scoped, tag = 'internal scratch']
  #allocation2 [shape = 'f32[8]{0:T(128)}', space=smem, size = 0x200, scoped, tag = 'scratch operand']
  #allocation3 [shape = 'f32[8]{0:T(128)}', space=smem, size = 0x200, scoped, tag = 'scratch operand']
  %s0 = inlined_call_operand.hbm [shape: f32[8], index: 0, kind: input, shape index: {}]
  %s1 = inlined_call_operand.vmem [shape: f32[8], index: 1, kind: input, shape index: {}]
  %s2 = inlined_call_operand.vmem [shape: f32[8], index: 2, kind: input, shape index: {}]
  %s3 = inlined_call_operand.vmem [shape: f32[8], index: 3, kind: input, shape index: {}]
  %s4 = inlined_call_operand.vmem [shape: f32[8], index: 4, kind: input, shape index: {}]
  %s5 = inlined_call_operand.vmem [shape: f32[8], index: 5, kind: input, shape index: {}]
  %s6 = inlined_call_operand.vmem [shape: f32[8], index: 6, kind: input, shape index: {}]
  %s7 = inlined_call_operand.hbm [shape: f32[8], index: 7, kind: output, shape index: {0}]
  %s8 = inlined_call_operand.hbm [shape: f32[8,1,128], index: 8, kind: output, shape index: {1}]
  %9 = xla_tuple %s7, %s8
  %s10 = sld [smem:[#allocation0]]
  $region74: #{tpu_custom_call.1} parent=0
    _
  %s12 = ssub.s32 1, %s10
  %s13 = scalar_select 0, %s12, %s10
  $region1: #{tpu_custom_call.1} parent=0
    #allocation4 [shape = 'u8[512]{0}', space=smem, size = 0x200, scoped, tag = 'input window, operand 0, single buffered']
    #allocation5 [shape = 's32[1]{0}', space=sflag, size = 0x4, scoped, tag = 'scoped memory for tpu_custom_call.1']
    #allocation6 [shape = 's32[1]{0}', space=sflag, size = 0x4, scoped, tag = 'scoped memory for tpu_custom_call.1']
    #allocation7 [shape = 's32[1]{0}', space=sflag, size = 0x4, scoped, tag = 'scoped memory for tpu_custom_call.1']
    #allocation8 [shape = 's32[1]{0}', space=sflag, size = 0x4, scoped, tag = 'scoped memory for tpu_custom_call.1']
    #allocation9 [shape = 'u8[512]{0}', space=smem, size = 0x200, scoped, tag = 'input window, operand 1, single buffered']
    #allocation10 [shape = 'u8[512]{0}', space=smem, size = 0x200, scoped, tag = 'input window, operand 2, single buffered']
    #allocation11 [shape = 's32[1]{0}', space=sflag, size = 0x4, scoped, tag = 'scoped memory for tpu_custom_call.1']
    #allocation12 [shape = 'u8[512]{0}', space=smem, size = 0x200, scoped, tag = 'input window, operand 3, single buffered']
    #allocation13 [shape = 'u8[512]{0}', space=smem, size = 0x200, scoped, tag = 'input window, operand 4, single buffered']
    #allocation14 [shape = 's32[1]{0}', space=sflag, size = 0x4, scoped, tag = 'scoped memory for tpu_custom_call.1']
    #allocation15 [shape = 'u8[512]{0}', space=smem, size = 0x200, scoped, tag = 'input window, operand 5, single buffered']
    #allocation16 [shape = 'u8[512]{0}', space=smem, size = 0x200, scoped, tag = 'input window, operand 6, single buffered']
    #allocation17 [shape = 's32[1]{0}', space=sflag, size = 0x4, scoped, tag = 'scoped memory for tpu_custom_call.1']
    #allocation18 [shape = 'u8[512]{0}', space=smem, size = 0x200, scoped, tag = 'output window, operand 0, single buffered']
    #allocation19 [shape = 'u8[4096]{0}', space=vmem, size = 0x1000, scoped, tag = 'output window, operand 1, single buffered']
    %14 = vsyncpa [#allocation6], 0
    %15 = vsyncpa [#allocation8], 0
    %16 = vsyncpa [#allocation11], 0
    %17 = vsyncpa [#allocation14], 0
    %18 = vsyncpa [#allocation17], 0
    %19 = vsyncpa [#allocation7], 0
    %20 = vsyncpa [#allocation5], 0
    // Predicated region
    $region2: #{tpu_custom_call.1} parent=1 // pred_check
      _
    $region3: #{tpu_custom_call.1} parent=1 // pred_check_branch
      %22 = sbr.rel (0) target = $region5
    $region4: #{tpu_custom_call.1} parent=1 // pred_region
      %s24 = ssub.s32 16, 16
      %25 = vsyncadd [#allocation6], %s24
      %28 = dma.hbm_to_smem %s0, 16, [#allocation4], [#allocation6]
    $region5: #{tpu_custom_call.1} parent=1 // pred_fallthru
      _
    // Predicated region
    $region6: #{tpu_custom_call.1} parent=1 // pred_check
      _
    $region7: #{tpu_custom_call.1} parent=1 // pred_check_branch
      %30 = sbr.rel (0) target = $region9
    $region8: #{tpu_custom_call.1} parent=1 // pred_region
      %s32 = ssub.s32 16, 16
      %33 = vsyncadd [#allocation8], %s32
      %s35 = sshll.u32 %s1, 4
      %s36 = int_to_ptr.vmem [resolvable:$true] %s35
      %38 = dma.vmem_to_smem %s36, 16, [#allocation9], [#allocation8]
    $region9: #{tpu_custom_call.1} parent=1 // pred_fallthru
      _
    // Predicated region
    $region10: #{tpu_custom_call.1} parent=1 // pred_check
      _
    $region11: #{tpu_custom_call.1} parent=1 // pred_check_branch
      %40 = sbr.rel (0) target = $region13
    $region12: #{tpu_custom_call.1} parent=1 // pred_region
      %s42 = ssub.s32 16, 16
      %43 = vsyncadd [#allocation11], %s42
      %s45 = sshll.u32 %s2, 4
      %s46 = int_to_ptr.vmem [resolvable:$true] %s45
      %48 = dma.vmem_to_smem %s46, 16, [#allocation10], [#allocation11]
    $region13: #{tpu_custom_call.1} parent=1 // pred_fallthru
      _
    // Predicated region
    $region14: #{tpu_custom_call.1} parent=1 // pred_check
      _
    $region15: #{tpu_custom_call.1} parent=1 // pred_check_branch
      %50 = sbr.rel (0) target = $region17
    $region16: #{tpu_custom_call.1} parent=1 // pred_region
      %s52 = ssub.s32 16, 16
      %53 = vsyncadd [#allocation11], %s52
      %s55 = sshll.u32 %s3, 4
      %s56 = int_to_ptr.vmem [resolvable:$true] %s55
      %58 = dma.vmem_to_smem %s56, 16, [#allocation12], [#allocation11]
    $region17: #{tpu_custom_call.1} parent=1 // pred_fallthru
      _
    // Predicated region
    $region18: #{tpu_custom_call.1} parent=1 // pred_check
      _
    $region19: #{tpu_custom_call.1} parent=1 // pred_check_branch
      %60 = sbr.rel (0) target = $region21
    $region20: #{tpu_custom_call.1} parent=1 // pred_region
      %s62 = ssub.s32 16, 16
      %63 = vsyncadd [#allocation14], %s62
      %s65 = sshll.u32 %s4, 4
      %s66 = int_to_ptr.vmem [resolvable:$true] %s65
      %68 = dma.vmem_to_smem %s66, 16, [#allocation13], [#allocation14]
    $region21: #{tpu_custom_call.1} parent=1 // pred_fallthru
      _
    // Predicated region
    $region22: #{tpu_custom_call.1} parent=1 // pred_check
      _
    $region23: #{tpu_custom_call.1} parent=1 // pred_check_branch
      %70 = sbr.rel (0) target = $region25
    $region24: #{tpu_custom_call.1} parent=1 // pred_region
      %s72 = ssub.s32 16, 16
      %73 = vsyncadd [#allocation14], %s72
      %s75 = sshll.u32 %s5, 4
      %s76 = int_to_ptr.vmem [resolvable:$true] %s75
      %78 = dma.vmem_to_smem %s76, 16, [#allocation15], [#allocation14]
    $region25: #{tpu_custom_call.1} parent=1 // pred_fallthru
      _
    // Predicated region
    $region26: #{tpu_custom_call.1} parent=1 // pred_check
      _
    $region27: #{tpu_custom_call.1} parent=1 // pred_check_branch
      %80 = sbr.rel (0) target = $region29
    $region28: #{tpu_custom_call.1} parent=1 // pred_region
      %s82 = ssub.s32 16, 16
      %83 = vsyncadd [#allocation17], %s82
      %s85 = sshll.u32 %s6, 4
      %s86 = int_to_ptr.vmem [resolvable:$true] %s85
      %88 = dma.vmem_to_smem %s86, 16, [#allocation16], [#allocation17]
    $region29: #{tpu_custom_call.1} parent=1 // pred_fallthru
      _
    // Predicated region
    $region30: #{tpu_custom_call.1} parent=1 // pred_check
      _
    $region31: #{tpu_custom_call.1} parent=1 // pred_check_branch
      %90 = sbr.rel (0) target = $region33
    $region32: #{tpu_custom_call.1} parent=1 // pred_region
      %91 = dma.done [#allocation6], 16
    $region33: #{tpu_custom_call.1} parent=1 // pred_fallthru
      _
    // Predicated region
    $region34: #{tpu_custom_call.1} parent=1 // pred_check
      _
    $region35: #{tpu_custom_call.1} parent=1 // pred_check_branch
      %93 = sbr.rel (0) target = $region37
    $region36: #{tpu_custom_call.1} parent=1 // pred_region
      %94 = dma.done [#allocation8], 16
    $region37: #{tpu_custom_call.1} parent=1 // pred_fallthru
      _
    // Predicated region
    $region38: #{tpu_custom_call.1} parent=1 // pred_check
      _
    $region39: #{tpu_custom_call.1} parent=1 // pred_check_branch
      %96 = sbr.rel (0) target = $region41
    $region40: #{tpu_custom_call.1} parent=1 // pred_region
      %97 = dma.done [#allocation11], 16
    $region41: #{tpu_custom_call.1} parent=1 // pred_fallthru
      _
    // Predicated region
    $region42: #{tpu_custom_call.1} parent=1 // pred_check
      _
    $region43: #{tpu_custom_call.1} parent=1 // pred_check_branch
      %99 = sbr.rel (0) target = $region45
    $region44: #{tpu_custom_call.1} parent=1 // pred_region
      %100 = dma.done [#allocation11], 16
    $region45: #{tpu_custom_call.1} parent=1 // pred_fallthru
      _
    // Predicated region
    $region46: #{tpu_custom_call.1} parent=1 // pred_check
      _
    $region47: #{tpu_custom_call.1} parent=1 // pred_check_branch
      %102 = sbr.rel (0) target = $region49
    $region48: #{tpu_custom_call.1} parent=1 // pred_region
      %103 = dma.done [#allocation14], 16
    $region49: #{tpu_custom_call.1} parent=1 // pred_fallthru
      _
    // Predicated region
    $region50: #{tpu_custom_call.1} parent=1 // pred_check
      _
    $region51: #{tpu_custom_call.1} parent=1 // pred_check_branch
      %105 = sbr.rel (0) target = $region53
    $region52: #{tpu_custom_call.1} parent=1 // pred_region
      %106 = dma.done [#allocation14], 16
    $region53: #{tpu_custom_call.1} parent=1 // pred_fallthru
      _
    // Predicated region
    $region54: #{tpu_custom_call.1} parent=1 // pred_check
      _
    $region55: #{tpu_custom_call.1} parent=1 // pred_check_branch
      %108 = sbr.rel (0) target = $region57
    $region56: #{tpu_custom_call.1} parent=1 // pred_region
      %109 = dma.done [#allocation17], 16
    $region57: #{tpu_custom_call.1} parent=1 // pred_fallthru
      _
    %110 = sfence
    %v111 = vlaneseq
    %v112 = vand.u32 %v111, 127
    %s113 = sld [smem:[#allocation4]]
    %s114 = ssub.f32 %s113, 0.5
    %s115 = sld [smem:[#allocation9]]
    %s116 = smul.f32 %s115, %s114
    %s117 = sadd.f32 %s116, 0.5
    %s118 = sld [smem:[#allocation10]]
    %s119 = smul.f32 %s118, %s114
    %s120 = sadd.f32 %s119, 0.0
    %s121 = scalar_lea.smem [#allocation2], 0
    %122 = sst [smem:[%s121]] %s117
    %s123 = scalar_lea.smem [#allocation3], 0
    %124 = sst [smem:[%s123]] %s120
    %s125 = smul.f32 %s120, 8.0
    %s126 = sadd.f32 %s117, %s125
    %s127 = sld [smem:[#allocation4 + $0x1]]
    %s128 = ssub.f32 %s127, %s126
    %s129 = sld [smem:[#allocation9 + $0x1]]
    %s130 = smul.f32 %s129, %s128
    %s131 = sadd.f32 %s126, %s130
    %s132 = sld [smem:[#allocation10 + $0x1]]
    %s133 = smul.f32 %s132, %s128
    %s134 = sadd.f32 %s120, %s133
    %s135 = scalar_lea.smem [#allocation2], 1
    %136 = sst [smem:[%s135]] %s131
    %s137 = scalar_lea.smem [#allocation3], 1
    %138 = sst [smem:[%s137]] %s134
    %s139 = smul.f32 %s134, 8.0
    %s140 = sadd.f32 %s131, %s139
    %s141 = sld [smem:[#allocation4 + $0x2]]
    %s142 = ssub.f32 %s141, %s140
    %s143 = sld [smem:[#allocation9 + $0x2]]
    %s144 = smul.f32 %s143, %s142
    %s145 = sadd.f32 %s140, %s144
    %s146 = sld [smem:[#allocation10 + $0x2]]
    %s147 = smul.f32 %s146, %s142
    %s148 = sadd.f32 %s134, %s147
    %s149 = scalar_lea.smem [#allocation2], 2
    %150 = sst [smem:[%s149]] %s145
    %s151 = scalar_lea.smem [#allocation3], 2
    %152 = sst [smem:[%s151]] %s148
    %s153 = smul.f32 %s148, 8.0
    %s154 = sadd.f32 %s145, %s153
    %s155 = sld [smem:[#allocation4 + $0x3]]
    %s156 = ssub.f32 %s155, %s154
    %s157 = sld [smem:[#allocation9 + $0x3]]
    %s158 = smul.f32 %s157, %s156
    %s159 = sadd.f32 %s154, %s158
    %s160 = sld [smem:[#allocation10 + $0x3]]
    %s161 = smul.f32 %s160, %s156
    %s162 = sadd.f32 %s148, %s161
    %s163 = scalar_lea.smem [#allocation2], 3
    %164 = sst [smem:[%s163]] %s159
    %s165 = scalar_lea.smem [#allocation3], 3
    %166 = sst [smem:[%s165]] %s162
    %s167 = smul.f32 %s162, 8.0
    %s168 = sadd.f32 %s159, %s167
    %s169 = sld [smem:[#allocation4 + $0x4]]
    %s170 = ssub.f32 %s169, %s168
    %s171 = sld [smem:[#allocation9 + $0x4]]
    %s172 = smul.f32 %s171, %s170
    %s173 = sadd.f32 %s168, %s172
    %s174 = sld [smem:[#allocation10 + $0x4]]
    %s175 = smul.f32 %s174, %s170
    %s176 = sadd.f32 %s162, %s175
    %s177 = scalar_lea.smem [#allocation2], 4
    %178 = sst [smem:[%s177]] %s173
    %s179 = scalar_lea.smem [#allocation3], 4
    %180 = sst [smem:[%s179]] %s176
    %s181 = smul.f32 %s176, 8.0
    %s182 = sadd.f32 %s173, %s181
    %s183 = sld [smem:[#allocation4 + $0x5]]
    %s184 = ssub.f32 %s183, %s182
    %s185 = sld [smem:[#allocation9 + $0x5]]
    %s186 = smul.f32 %s185, %s184
    %s187 = sadd.f32 %s182, %s186
    %s188 = sld [smem:[#allocation10 + $0x5]]
    %s189 = smul.f32 %s188, %s184
    %s190 = sadd.f32 %s176, %s189
    %s191 = scalar_lea.smem [#allocation2], 5
    %192 = sst [smem:[%s191]] %s187
    %s193 = scalar_lea.smem [#allocation3], 5
    %194 = sst [smem:[%s193]] %s190
    %s195 = smul.f32 %s190, 8.0
    %s196 = sadd.f32 %s187, %s195
    %s197 = sld [smem:[#allocation4 + $0x6]]
    %s198 = ssub.f32 %s197, %s196
    %s199 = sld [smem:[#allocation9 + $0x6]]
    %s200 = smul.f32 %s199, %s198
    %s201 = sadd.f32 %s196, %s200
    %s202 = sld [smem:[#allocation10 + $0x6]]
    %s203 = smul.f32 %s202, %s198
    %s204 = sadd.f32 %s190, %s203
    %s205 = scalar_lea.smem [#allocation2], 6
    %206 = sst [smem:[%s205]] %s201
    %s207 = scalar_lea.smem [#allocation3], 6
    %208 = sst [smem:[%s207]] %s204
    %s209 = smul.f32 %s204, 8.0
    %s210 = sadd.f32 %s201, %s209
    %s211 = sld [smem:[#allocation4 + $0x7]]
    %s212 = ssub.f32 %s211, %s210
    %s213 = sld [smem:[#allocation9 + $0x7]]
    %s214 = smul.f32 %s213, %s212
    %s215 = sadd.f32 %s210, %s214
    %s216 = sld [smem:[#allocation10 + $0x7]]
    %s217 = smul.f32 %s216, %s212
    %s218 = sadd.f32 %s204, %s217
    %s219 = scalar_lea.smem [#allocation2], 7
    %220 = sst [smem:[%s219]] %s215
    %s221 = scalar_lea.smem [#allocation3], 7
    %222 = sst [smem:[%s221]] %s218
    %s223 = scalar_lea.smem [#allocation18], 7
    %224 = sst [smem:[%s223]] %s215
    %v225 = vstv %s215
    %v226 = vcvt.f32.s32.to.zero.pseudo %v225
    %vm227 = vcmp.eq.s32.totalorder %v112, %v226
    %v228 = vsel %vm227, 1, 0
    %v229 = vcvt.s32.f32 %v228
    %s230 = scalar_lea.vmem [#allocation19], 7
    %231 = vst [vmem:[%s230] sm:$0x1] %v229
    %s232 = sld [smem:[#allocation2 + $0x6]]
    %s233 = sld [smem:[#allocation3 + $0x6]]
    %s234 = smul.f32 %s233, 8.0
    %s235 = sadd.f32 %s232, %s234
    %s236 = ssub.f32 %s215, %s235
    %s237 = ssub.f32 %s218, %s233
    %s238 = sld [smem:[#allocation12 + $0x6]]
    %s239 = smul.f32 %s238, %s236
    %s240 = sadd.f32 %s232, %s239
    %s241 = sld [smem:[#allocation13 + $0x6]]
    %s242 = smul.f32 %s241, %s237
    %s243 = sadd.f32 %s240, %s242
    %s244 = sld [smem:[#allocation15 + $0x6]]
    %s245 = smul.f32 %s244, %s236
    %s246 = sadd.f32 %s233, %s245
    %s247 = sld [smem:[#allocation16 + $0x6]]
    %s248 = smul.f32 %s247, %s237
    %s249 = sadd.f32 %s246, %s248
    %s250 = scalar_lea.smem [#allocation18], 6
    %251 = sst [smem:[%s250]] %s243
    %v252 = vstv %s243
    %v253 = vcvt.f32.s32.to.zero.pseudo %v252
    %vm254 = vcmp.eq.s32.totalorder %v112, %v253
    %v255 = vsel %vm254, 1, 0
    %v256 = vcvt.s32.f32 %v255
    %s257 = scalar_lea.vmem [#allocation19], 6
    %258 = vst [vmem:[%s257] sm:$0x1] %v256
    %s259 = sld [smem:[#allocation2 + $0x5]]
    %s260 = sld [smem:[#allocation3 + $0x5]]
    %s261 = smul.f32 %s260, 8.0
    %s262 = sadd.f32 %s259, %s261
    %s263 = ssub.f32 %s243, %s262
    %s264 = ssub.f32 %s249, %s260
    %s265 = sld [smem:[#allocation12 + $0x5]]
    %s266 = smul.f32 %s265, %s263
    %s267 = sadd.f32 %s259, %s266
    %s268 = sld [smem:[#allocation13 + $0x5]]
    %s269 = smul.f32 %s268, %s264
    %s270 = sadd.f32 %s267, %s269
    %s271 = sld [smem:[#allocation15 + $0x5]]
    %s272 = smul.f32 %s271, %s263
    %s273 = sadd.f32 %s260, %s272
    %s274 = sld [smem:[#allocation16 + $0x5]]
    %s275 = smul.f32 %s274, %s264
    %s276 = sadd.f32 %s273, %s275
    %s277 = scalar_lea.smem [#allocation18], 5
    %278 = sst [smem:[%s277]] %s270
    %v279 = vstv %s270
    %v280 = vcvt.f32.s32.to.zero.pseudo %v279
    %vm281 = vcmp.eq.s32.totalorder %v112, %v280
    %v282 = vsel %vm281, 1, 0
    %v283 = vcvt.s32.f32 %v282
    %s284 = scalar_lea.vmem [#allocation19], 5
    %285 = vst [vmem:[%s284] sm:$0x1] %v283
    %s286 = sld [smem:[#allocation2 + $0x4]]
    %s287 = sld [smem:[#allocation3 + $0x4]]
    %s288 = smul.f32 %s287, 8.0
    %s289 = sadd.f32 %s286, %s288
    %s290 = ssub.f32 %s270, %s289
    %s291 = ssub.f32 %s276, %s287
    %s292 = sld [smem:[#allocation12 + $0x4]]
    %s293 = smul.f32 %s292, %s290
    %s294 = sadd.f32 %s286, %s293
    %s295 = sld [smem:[#allocation13 + $0x4]]
    %s296 = smul.f32 %s295, %s291
    %s297 = sadd.f32 %s294, %s296
    %s298 = sld [smem:[#allocation15 + $0x4]]
    %s299 = smul.f32 %s298, %s290
    %s300 = sadd.f32 %s287, %s299
    %s301 = sld [smem:[#allocation16 + $0x4]]
    %s302 = smul.f32 %s301, %s291
    %s303 = sadd.f32 %s300, %s302
    %s304 = scalar_lea.smem [#allocation18], 4
    %305 = sst [smem:[%s304]] %s297
    %v306 = vstv %s297
    %v307 = vcvt.f32.s32.to.zero.pseudo %v306
    %vm308 = vcmp.eq.s32.totalorder %v112, %v307
    %v309 = vsel %vm308, 1, 0
    %v310 = vcvt.s32.f32 %v309
    %s311 = scalar_lea.vmem [#allocation19], 4
    %312 = vst [vmem:[%s311] sm:$0x1] %v310
    %s313 = sld [smem:[#allocation2 + $0x3]]
    %s314 = sld [smem:[#allocation3 + $0x3]]
    %s315 = smul.f32 %s314, 8.0
    %s316 = sadd.f32 %s313, %s315
    %s317 = ssub.f32 %s297, %s316
    %s318 = ssub.f32 %s303, %s314
    %s319 = sld [smem:[#allocation12 + $0x3]]
    %s320 = smul.f32 %s319, %s317
    %s321 = sadd.f32 %s313, %s320
    %s322 = sld [smem:[#allocation13 + $0x3]]
    %s323 = smul.f32 %s322, %s318
    %s324 = sadd.f32 %s321, %s323
    %s325 = sld [smem:[#allocation15 + $0x3]]
    %s326 = smul.f32 %s325, %s317
    %s327 = sadd.f32 %s314, %s326
    %s328 = sld [smem:[#allocation16 + $0x3]]
    %s329 = smul.f32 %s328, %s318
    %s330 = sadd.f32 %s327, %s329
    %s331 = scalar_lea.smem [#allocation18], 3
    %332 = sst [smem:[%s331]] %s324
    %v333 = vstv %s324
    %v334 = vcvt.f32.s32.to.zero.pseudo %v333
    %vm335 = vcmp.eq.s32.totalorder %v112, %v334
    %v336 = vsel %vm335, 1, 0
    %v337 = vcvt.s32.f32 %v336
    %s338 = scalar_lea.vmem [#allocation19], 3
    %339 = vst [vmem:[%s338] sm:$0x1] %v337
    %s340 = sld [smem:[#allocation2 + $0x2]]
    %s341 = sld [smem:[#allocation3 + $0x2]]
    %s342 = smul.f32 %s341, 8.0
    %s343 = sadd.f32 %s340, %s342
    %s344 = ssub.f32 %s324, %s343
    %s345 = ssub.f32 %s330, %s341
    %s346 = sld [smem:[#allocation12 + $0x2]]
    %s347 = smul.f32 %s346, %s344
    %s348 = sadd.f32 %s340, %s347
    %s349 = sld [smem:[#allocation13 + $0x2]]
    %s350 = smul.f32 %s349, %s345
    %s351 = sadd.f32 %s348, %s350
    %s352 = sld [smem:[#allocation15 + $0x2]]
    %s353 = smul.f32 %s352, %s344
    %s354 = sadd.f32 %s341, %s353
    %s355 = sld [smem:[#allocation16 + $0x2]]
    %s356 = smul.f32 %s355, %s345
    %s357 = sadd.f32 %s354, %s356
    %s358 = scalar_lea.smem [#allocation18], 2
    %359 = sst [smem:[%s358]] %s351
    %v360 = vstv %s351
    %v361 = vcvt.f32.s32.to.zero.pseudo %v360
    %vm362 = vcmp.eq.s32.totalorder %v112, %v361
    %v363 = vsel %vm362, 1, 0
    %v364 = vcvt.s32.f32 %v363
    %s365 = scalar_lea.vmem [#allocation19], 2
    %366 = vst [vmem:[%s365] sm:$0x1] %v364
    %s367 = sld [smem:[#allocation2 + $0x1]]
    %s368 = sld [smem:[#allocation3 + $0x1]]
    %s369 = smul.f32 %s368, 8.0
    %s370 = sadd.f32 %s367, %s369
    %s371 = ssub.f32 %s351, %s370
    %s372 = ssub.f32 %s357, %s368
    %s373 = sld [smem:[#allocation12 + $0x1]]
    %s374 = smul.f32 %s373, %s371
    %s375 = sadd.f32 %s367, %s374
    %s376 = sld [smem:[#allocation13 + $0x1]]
    %s377 = smul.f32 %s376, %s372
    %s378 = sadd.f32 %s375, %s377
    %s379 = sld [smem:[#allocation15 + $0x1]]
    %s380 = smul.f32 %s379, %s371
    %s381 = sadd.f32 %s368, %s380
    %s382 = sld [smem:[#allocation16 + $0x1]]
    %s383 = smul.f32 %s382, %s372
    %s384 = sadd.f32 %s381, %s383
    %s385 = scalar_lea.smem [#allocation18], 1
    %386 = sst [smem:[%s385]] %s378
    %v387 = vstv %s378
    %v388 = vcvt.f32.s32.to.zero.pseudo %v387
    %vm389 = vcmp.eq.s32.totalorder %v112, %v388
    %v390 = vsel %vm389, 1, 0
    %v391 = vcvt.s32.f32 %v390
    %s392 = scalar_lea.vmem [#allocation19], 1
    %393 = vst [vmem:[%s392] sm:$0x1] %v391
    %s394 = sld [smem:[#allocation2]]
    %s395 = sld [smem:[#allocation3]]
    %s396 = smul.f32 %s395, 8.0
    %s397 = sadd.f32 %s394, %s396
    %s398 = ssub.f32 %s378, %s397
    %s399 = ssub.f32 %s384, %s395
    %s400 = sld [smem:[#allocation12]]
    %s401 = smul.f32 %s400, %s398
    %s402 = sadd.f32 %s394, %s401
    %s403 = sld [smem:[#allocation13]]
    %s404 = smul.f32 %s403, %s399
    %s405 = sadd.f32 %s402, %s404
    %s406 = scalar_lea.smem [#allocation18], 0
    %407 = sst [smem:[%s406]] %s405
    %v408 = vstv %s405
    %v409 = vcvt.f32.s32.to.zero.pseudo %v408
    %vm410 = vcmp.eq.s32.totalorder %v112, %v409
    %v411 = vsel %vm410, 1, 0
    %v412 = vcvt.s32.f32 %v411
    %413 = vst [vmem:[#allocation19] sm:$0x1] %v412
    // Predicated region
    $region58: #{tpu_custom_call.1} parent=1 // pred_check
      _
    $region59: #{tpu_custom_call.1} parent=1 // pred_check_branch
      %415 = sbr.rel (0) target = $region61
    $region60: #{tpu_custom_call.1} parent=1 // pred_region
      %s417 = ssub.s32 16, 16
      %418 = vsyncadd [#allocation7], %s417
      %421 = dma.smem_to_hbm [#allocation18], 16, %s7, [#allocation7]
    $region61: #{tpu_custom_call.1} parent=1 // pred_fallthru
      _
    // Predicated region
    $region62: #{tpu_custom_call.1} parent=1 // pred_check
      _
    $region63: #{tpu_custom_call.1} parent=1 // pred_check_branch
      %423 = sbr.rel (0) target = $region65
    $region64: #{tpu_custom_call.1} parent=1 // pred_region
      %s425 = ssub.s32 128, 128
      %426 = vsyncadd [#allocation5], %s425
      %s427 = sshll.u32 [#allocation19], 4
      %s428 = int_to_ptr.vmem [resolvable:$true] %s427
      %433 = dma.vmem_to_hbm [thread:$0]  %s428, 128, %s8, [#allocation5], 16, 16, 1
    $region65: #{tpu_custom_call.1} parent=1 // pred_fallthru
      _
    // Predicated region
    $region66: #{tpu_custom_call.1} parent=1 // pred_check
      _
    $region67: #{tpu_custom_call.1} parent=1 // pred_check_branch
      %435 = sbr.rel (0) target = $region69
    $region68: #{tpu_custom_call.1} parent=1 // pred_region
      %436 = dma.done [#allocation7], 16
    $region69: #{tpu_custom_call.1} parent=1 // pred_fallthru
      _
    // Predicated region
    $region70: #{tpu_custom_call.1} parent=1 // pred_check
      _
    $region71: #{tpu_custom_call.1} parent=1 // pred_check_branch
      %438 = sbr.rel (0) target = $region73
    $region72: #{tpu_custom_call.1} parent=1 // pred_region
      %439 = dma.done [#allocation5], 128
    $region73: #{tpu_custom_call.1} parent=1 // pred_fallthru
      _
    %440 = sfence
    %441 = vsyncpa [#allocation5], 1
    %442 = vsyncpa [#allocation6], 1
    %443 = vsyncpa [#allocation7], 1
    %444 = vsyncpa [#allocation8], 1
    %445 = vsyncpa [#allocation11], 1
    %446 = vsyncpa [#allocation14], 1
    %447 = vsyncpa [#allocation17], 1

</llo_original>
